<compile_context>
chip_gen: v7x
topology: tpu7x:2x2x1
jax: 0.10.0
libtpu: 0.0.40
codegen_flags: <defaults>
</compile_context>

<pallas_src>
import jax
import jax.numpy as jnp
from jax import lax
from jax.experimental import pallas as pl
from jax.experimental.pallas import tpu as pltpu


# ---------------- Conv2d(3x3, pad=1) + folded BN + bias + ReLU ---------------

def _conv_matmul_relu_kernel(p_ref, w_ref, b_ref, o_ref):
    # p_ref: (H*W, 9*C) patches of one image; w_ref: (9*C, C_out) BN-folded
    # weights; b_ref: (H*W, C_out) border-aware bias map (conv bias + BN shift)
    acc = jnp.dot(p_ref[...], w_ref[...], preferred_element_type=jnp.float32)
    o_ref[...] = jnp.maximum(acc + b_ref[...], 0.0).astype(o_ref.dtype)


def conv3x3_bn_relu(x_nchw, w_mat, bias_map, *, kernel_sz=3):
    """x_nchw: raw input (B,C,H,W).  w_mat: (KH*KW*C, C_out) conv weights with
    the BN scale folded in, laid out in NHWC-im2col column order.  bias_map:
    (H*W, C_out) = conv bias + BN-shift contribution (zero-padding aware).
    Returns NHWC-flattened ReLU(conv(bn(x))) of shape (B, H*W*C_out)."""
    B, C, H, W = x_nchw.shape
    KH = KW = kernel_sz
    C_out = w_mat.shape[1]
    HW = H * W

    # One small NHWC transpose of the raw activation only (never of the
    # 9x-expanded patches).
    x_nhwc = jnp.transpose(x_nchw, (0, 2, 3, 1))                 # (B,H,W,C)
    xp = jnp.pad(x_nhwc, ((0, 0), (1, 1), (1, 1), (0, 0)))
    # Channel-axis concat of the 9 shifted windows -> column index
    # (kh*KW + kw)*C + c; the final flatten is metadata-only in NHWC.
    patches = jnp.concatenate(
        [xp[:, kh:kh + H, kw:kw + W, :]
         for kh in range(KH) for kw in range(KW)],
        axis=-1).reshape(B * HW, KH * KW * C)

    out = pl.pallas_call(
        _conv_matmul_relu_kernel,
        out_shape=jax.ShapeDtypeStruct((B * HW, C_out), x_nchw.dtype),
        grid=(B,),
        in_specs=[
            pl.BlockSpec((HW, KH * KW * C), lambda b: (b, 0)),
            pl.BlockSpec((KH * KW * C, C_out), lambda b: (0, 0)),
            pl.BlockSpec((HW, C_out), lambda b: (0, 0)),
        ],
        out_specs=pl.BlockSpec((HW, C_out), lambda b: (b, 0)),
        compiler_params=pltpu.CompilerParams(
            dimension_semantics=("parallel",)),
    )(patches, w_mat, bias_map)
    # Free metadata reshape: rows are (b,h,w) -> (B, H*W*C_out) NHWC-flat.
    return out.reshape(B, HW * C_out)


# --------------------------- fc1 + ReLU + fc2 (fused) ------------------------

def _fc_fused_kernel(h_ref, w1_ref, b1_ref, w2_ref, o_ref, acc_ref):
    k = pl.program_id(1)

    @pl.when(k == 0)
    def _():
        acc_ref[...] = jnp.zeros_like(acc_ref)

    # bf16 x bf16 MXU matmul, f32 accumulation (W1 is the dominant HBM stream).
    acc_ref[...] += jnp.dot(h_ref[...].astype(jnp.bfloat16), w1_ref[...],
                            preferred_element_type=jnp.float32)

    @pl.when(k == pl.num_programs(1) - 1)
    def _():
        hidden = jnp.maximum(acc_ref[...] + b1_ref[...], 0.0)
        partial = jnp.dot(hidden, w2_ref[...],
                          preferred_element_type=jnp.float32)
        o_ref[...] = partial[None, :, :].astype(o_ref.dtype)


def fc1_relu_fc2(h_flat, w1_bf16, b1, w2_t, b2, *, block_k, n_split):
    """h_flat: (B, K1) NHWC-flat conv output (f32).
    w1_bf16: (K1_padded, H1) column-permuted, BN-era fc1 weight in bf16.
    w2_t:   (H1, num_classes) f32.  Returns (B, num_classes) f32 logits."""
    B, K1 = h_flat.shape
    K1p, H1 = w1_bf16.shape
    C = w2_t.shape[1]
    if K1p > K1:  # zero-padded K tail (padded rows of W1 are zero -> no-op)
        h_flat = jnp.pad(h_flat, ((0, 0), (0, K1p - K1)))
    grid_k = K1p // block_k
    Hs = H1 // n_split

    # VMEM budget per step: W1 block = block_k*Hs*2B = 4 MiB (8 MiB double-
    # buffered) + small h/acc/out blocks -> fits v5e/v6e/v7x scoped defaults.
    partial = pl.pallas_call(
        _fc_fused_kernel,
        out_shape=jax.ShapeDtypeStruct((n_split, B, C), h_flat.dtype),
        grid=(n_split, grid_k),
        in_specs=[
            pl.BlockSpec((B, block_k), lambda j, k: (0, k)),
            pl.BlockSpec((block_k, Hs), lambda j, k: (k, j)),
            pl.BlockSpec((1, Hs), lambda j, k: (0, j)),
            pl.BlockSpec((Hs, C), lambda j, k: (j, 0)),
        ],
        out_specs=pl.BlockSpec((1, B, C), lambda j, k: (j, 0, 0)),
        scratch_shapes=[pltpu.VMEM((B, Hs), jnp.float32)],
        compiler_params=pltpu.CompilerParams(
            dimension_semantics=("parallel", "arbitrary"),
            vmem_limit_bytes=32 * 1024 * 1024),
    )(h_flat, w1_bf16, b1.reshape(1, H1), w2_t)
    # Tiny combine of the hidden-dim halves (2 x B x num_classes) + fc2 bias.
    return partial.sum(axis=0) + b2.reshape(1, C)


# ----------------------------------- Model -----------------------------------

class OneConvLayerNet:
    """JAX/Pallas equivalent of the PyTorch OneConvLayerNet forward pass."""

    def __init__(self, in_size, in_channels, num_classes,
                 conv_channels=64, kernel_sz=3, *, key, dtype=jnp.float32):
        assert kernel_sz == 3, "padding=1 in the reference assumes kernel_sz=3"
        self.in_size = in_size
        self.in_channels = in_channels
        self.conv_channels = conv_channels
        self.num_classes = num_classes
        self.kernel_sz = kernel_sz
        self.eps = 1e-5

        keys = jax.random.split(key, 8)
        fan_flat = conv_channels * in_size * in_size
        self.w_conv = 0.1 * jax.random.normal(
            keys[0], (conv_channels, in_channels, kernel_sz, kernel_sz), dtype)
        self.b_conv = 0.1 * jax.random.normal(keys[1], (conv_channels,), dtype)
        self.w1_torch = 0.01 * jax.random.normal(keys[2], (512, fan_flat), dtype)
        self.b1 = 0.01 * jax.random.normal(keys[3], (512,), dtype)
        self.w2_torch = 0.05 * jax.random.normal(keys[4], (num_classes, 512), dtype)
        self.b2 = 0.05 * jax.random.normal(keys[5], (num_classes,), dtype)
        self.bn_gamma = 1.0 + 0.1 * jax.random.normal(keys[6], (in_channels,), dtype)
        self.bn_beta = 0.1 * jax.random.normal(keys[7], (in_channels,), dtype)
        self.bn_mean = jnp.linspace(-0.2, 0.2, in_channels).astype(dtype)
        self.bn_var = jnp.linspace(0.5, 1.5, in_channels).astype(dtype)

        # ---- One-time parameter prep (all layout / folding, no per-call cost)
        S, Cc, Cin, K = in_size, conv_channels, in_channels, kernel_sz

        # 1) Fold eval-mode BN into the conv: scale into weight columns, shift
        #    into a border-aware per-(h,w,cout) bias map (zero padding is NOT
        #    shifted, so the map is computed with an actual padded conv of the
        #    constant shift image).
        scale = self.bn_gamma * lax.rsqrt(self.bn_var + self.eps)     # (Cin,)
        shift = self.bn_beta - self.bn_mean * scale                   # (Cin,)
        w_folded = self.w_conv * scale[None, :, None, None]
        # NHWC-im2col column order: row index = (kh*K + kw)*Cin + c
        self.w_conv_mat = jnp.transpose(w_folded, (2, 3, 1, 0)).reshape(
            K * K * Cin, Cc)
        shift_img = jnp.broadcast_to(shift[None, :, None, None], (1, Cin, S, S))
        bmap = lax.conv_general_dilated(
            shift_img, self.w_conv, window_strides=(1, 1),
            padding=((1, 1), (1, 1)),
            dimension_numbers=("NCHW", "OIHW", "NCHW"),
            precision=lax.Precision.HIGHEST)[0]                       # (Cc,S,S)
        bmap = bmap + self.b_conv[:, None, None]
        self.bias_map = jnp.transpose(bmap, (1, 2, 0)).reshape(S * S, Cc)

        # 2) Fuse the NCHW flatten .view() into fc1 by permuting fc1's weight
        #    columns from NCHW index (c*S*S + h*S + w) to the conv kernel's
        #    NHWC index ((h*S + w)*Cc + c); cast to bf16 (dominant HBM stream)
        #    and pad the K dim to a multiple of the fc block size.
        w1_nhwc = (self.w1_torch.reshape(512, Cc, S, S)
                   .transpose(2, 3, 1, 0)                 # (h, w, c, 512)
                   .reshape(Cc * S * S, 512))
        K1 = Cc * S * S
        self._fc_block_k = min(8192, K1)
        kpad = (-K1) % self._fc_block_k
        if kpad:
            w1_nhwc = jnp.pad(w1_nhwc, ((0, kpad), (0, 0)))
        self.w1_nhwc_bf16 = w1_nhwc.astype(jnp.bfloat16)
        # Hidden-dim split for v7x dual-TensorCore; no-op cost on 1-TC chips.
        self._fc_n_split = 2 if (512 % 2 == 0 and 512 // 2 >= 128) else 1
        self.w2_t = self.w2_torch.T                       # (512, num_classes)

    def __call__(self, x):
        B = x.shape[0]
        # x.view(B, C, H, W): metadata-only reshape.
        x = x.reshape(B, self.in_channels, self.in_size, self.in_size)
        h = conv3x3_bn_relu(x, self.w_conv_mat, self.bias_map,
                            kernel_sz=self.kernel_sz)     # (B, H*W*C_out) NHWC
        return fc1_relu_fc2(h, self.w1_nhwc_bf16, self.b1, self.w2_t, self.b2,
                            block_k=self._fc_block_k,
                            n_split=self._fc_n_split)


# ------------------------------ Pure-JAX reference ---------------------------

def reference_forward(x, net):
    B = x.shape[0]
    xr = x.reshape(B, net.in_channels, net.in_size, net.in_size)
    scale = net.bn_gamma * lax.rsqrt(net.bn_var + net.eps)
    shift = net.bn_beta - net.bn_mean * scale
    xbn = xr * scale[None, :, None, None] + shift[None, :, None, None]
    conv = lax.conv_general_dilated(
        xbn, net.w_conv, window_strides=(1, 1), padding=((1, 1), (1, 1)),
        dimension_numbers=("NCHW", "OIHW", "NCHW"),
        precision=lax.Precision.HIGHEST)
    conv = jnp.maximum(conv + net.b_conv[None, :, None, None], 0.0)
    flat = conv.reshape(B, -1)                            # torch NCHW .view()
    h = jnp.maximum(
        jnp.dot(flat, net.w1_torch.T,
                precision=lax.Precision.HIGHEST) + net.b1, 0.0)
    return jnp.dot(h, net.w2_torch.T,
                   precision=lax.Precision.HIGHEST) + net.b2


if __name__ == "__main__":
    key = jax.random.PRNGKey(0)
    k_x, k_net = jax.random.split(key)

    # Small shapes consistent with the module: batch=2, in_channels=4,
    # in_size=16, conv_channels=64, num_classes=10.
    B, C_IN, S, N_CLS = 2, 4, 16, 10
    x = jax.random.normal(k_x, (B, C_IN, S, S), dtype=jnp.float32)

    net = OneConvLayerNet(S, C_IN, N_CLS, conv_channels=64, kernel_sz=3,
                          key=k_net)

    out = jax.block_until_ready(net(x))
    ref = jax.block_until_ready(reference_forward(x, net))

    assert out.shape == (B, N_CLS), out.shape
    assert out.dtype == jnp.float32
    assert bool(jnp.allclose(out, ref, rtol=2e-2, atol=2e-2)), (
        float(jnp.max(jnp.abs(out - ref))))

    print("KERNEL_OK")
</pallas_src>

<mosaic_0001>
module attributes {stable_mosaic.version = 11 : i64} {
  func.func @_conv_matmul_relu_kernel(%arg0: i32, %arg1: memref<256x36xf32, #tpu.memory_space<vmem>>, %arg2: memref<36x64xf32, #tpu.memory_space<vmem>>, %arg3: memref<256x64xf32, #tpu.memory_space<vmem>>, %arg4: memref<256x64xf32, #tpu.memory_space<vmem>>) attributes {dimension_semantics = [#tpu.dimension_semantics<parallel>], iteration_bounds = array<i64: 2>, scalar_prefetch = 0 : i64, scratch_operands = 0 : i64, tpu.core_type = #tpu.core_type<tc>, window_params = [{transform_indices = @transform_0, window_bounds = array<i64: 256, 36>}, {pipeline_mode = #tpu.pipeline_mode<synchronous>, transform_indices = @transform_1, window_bounds = array<i64: 36, 64>}, {pipeline_mode = #tpu.pipeline_mode<synchronous>, transform_indices = @transform_2, window_bounds = array<i64: 256, 64>}, {transform_indices = @transform_3, window_bounds = array<i64: 256, 64>}]} {
    %c0 = arith.constant 0 : index
    %c0_0 = arith.constant 0 : index
    %0 = vector.load %arg1[%c0, %c0_0] : memref<256x36xf32, #tpu.memory_space<vmem>>, vector<256x36xf32>
    %c0_1 = arith.constant 0 : index
    %c0_2 = arith.constant 0 : index
    %1 = vector.load %arg2[%c0_1, %c0_2] : memref<36x64xf32, #tpu.memory_space<vmem>>, vector<36x64xf32>
    %cst = arith.constant dense<0.000000e+00> : vector<256x64xf32>
    %2 = tpu.matmul %0, %1, %cst {dimension_numbers = #tpu.dot_dimension_numbers<[1], [0], [0], [1], [0, 0, 1, 1], [], []>} : vector<256x36xf32>, vector<36x64xf32>, vector<256x64xf32> -> vector<256x64xf32>
    %c0_3 = arith.constant 0 : index
    %c0_4 = arith.constant 0 : index
    %3 = vector.load %arg3[%c0_3, %c0_4] : memref<256x64xf32, #tpu.memory_space<vmem>>, vector<256x64xf32>
    %4 = arith.addf %2, %3 : vector<256x64xf32>
    %cst_5 = arith.constant 0.000000e+00 : f32
    %5 = vector.broadcast %cst_5 : f32 to vector<256x64xf32>
    %6 = arith.maximumf %4, %5 : vector<256x64xf32>
    %c0_6 = arith.constant 0 : index
    %c0_7 = arith.constant 0 : index
    %7 = vector.load %arg4[%c0_6, %c0_7] : memref<256x64xf32, #tpu.memory_space<vmem>>, vector<256x64xf32>
    tpu.vector_store %arg4[%c0_6, %c0_7], %6 {strides = array<i32>} : memref<256x64xf32, #tpu.memory_space<vmem>>, vector<256x64xf32>,
    return
  }
  func.func @transform_0(%arg0: i32) -> (i32, i32) {
    %c0_i32 = arith.constant 0 : i32
    %c0_i32_0 = arith.constant 0 : i32
    return %arg0, %c0_i32 : i32, i32
  }
  func.func @transform_1(%arg0: i32) -> (i32, i32) {
    %c0_i32 = arith.constant 0 : i32
    %c0_i32_0 = arith.constant 0 : i32
    %c0_i32_1 = arith.constant 0 : i32
    return %c0_i32, %c0_i32_0 : i32, i32
  }
  func.func @transform_2(%arg0: i32) -> (i32, i32) {
    %c0_i32 = arith.constant 0 : i32
    %c0_i32_0 = arith.constant 0 : i32
    %c0_i32_1 = arith.constant 0 : i32
    return %c0_i32, %c0_i32_0 : i32, i32
  }
  func.func @transform_3(%arg0: i32) -> (i32, i32) {
    %c0_i32 = arith.constant 0 : i32
    %c0_i32_0 = arith.constant 0 : i32
    return %arg0, %c0_i32 : i32, i32
  }
}

</mosaic_0001>

<llo_original>
// kernel: tpu_custom_call.1
$region0: #{tpu_custom_call.1}
  #allocation0 [shape = 'u32[]', space=smem, size = 0x4, offset = 0x4, fixed_abs, tag = 'smem constant byte address 0x4 - core index']
  #allocation1 [shape = 'u32[144,128]{1,0:T(1,128)}', space=vmem, size = 0x12000, scoped, tag = 'internal scratch']
  %s0 = inlined_call_operand.vmem [shape: f32[512,36], index: 0, kind: input, shape index: {}]
  %s1 = inlined_call_operand.vmem [shape: f32[36,64], index: 1, kind: input, shape index: {}]
  %s2 = inlined_call_operand.vmem [shape: f32[256,64], index: 2, kind: input, shape index: {}]
  %s3 = inlined_call_operand.vmem [shape: f32[512,64], index: 3, kind: output, shape index: {}]
  %s4 = sld [smem:[#allocation0]]
  $region45: #{tpu_custom_call.1} parent=0
    _
  %s6 = ssub.s32 1, %s4
  %s7 = scalar_select 0, %s6, %s4
  loop: start=0, step=1, limit=4
  $region2: #{tpu_custom_call.1} parent=0 // loop_pre_header
    _
  $region3: #{tpu_custom_call.1} parent=0 // loop_header
    %s9 = sphi 0, %s13
    %p10 = scmp.ge.s32.totalorder %s9, 4
    %s19 = sphi 0, %s21
    %s22 = sphi 0, %s19
    %s23 = sphi 0, %s22
    %s39 = sphi 0, %s23
    %s43 = sphi 0, %s43
    %s45 = sphi 0, %s43
    %s46 = sphi 0, %s45
    %s60 = sphi 0, %s46
    %s64 = sphi 0, %s64
    %s66 = sphi 0, %s64
    %s67 = sphi 0, %s66
    %s81 = sphi 0, %s67
    %s87 = sphi 0, %s89
    %s90 = sphi 0, %s87
    %s91 = sphi 0, %s90
    %s107 = sphi 0, %s91
  $region4: #{tpu_custom_call.1} parent=0 // loop_header_branch
    %12 = sbr.rel (%p10) target = $region8
  $region5: #{tpu_custom_call.1} parent=0 // loop_body
    %s14 = ssub.s32 %s9, 1
    %s15 = ssub.s32 %s9, 2
    %s16 = sadd.s32 %s9, 1
    %s17 = ssub.s32 %s9, %s16
    %p18 = scmp.eq.s32.totalorder %s17, 0
    %s20 = sadd.s32 %s19, 1
    %s21 = scalar_select %p18, %s19, %s20
    %p24 = pneg %p18
    %p25 = scmp.eq.s32.totalorder %s9, 1
    %p26 = por %p24, %p25
    %p27 = scmp.ne.s32.totalorder %s19, %s22
    %p28 = scmp.eq.s32.totalorder %s9, 0
    %p29 = por %p27, %p28
    %p30 = scmp.ne.s32.totalorder %s19, %s22
    %p31 = scmp.eq.s32.totalorder %s14, 1
    %p32 = por %p30, %p31
    %p33 = scmp.ne.s32.totalorder %s22, %s23
    %p34 = scmp.eq.s32.totalorder %s14, 0
    %p35 = por %p33, %p34
    %p36 = scmp.ne.s32.totalorder %s22, %s23
    %p37 = scmp.eq.s32.totalorder %s15, 1
    %p38 = por %p36, %p37
    %p40 = scmp.ne.s32.totalorder %s23, %s39
    %p41 = scmp.eq.s32.totalorder %s15, 0
    %p42 = por %p40, %p41
    %s44 = sadd.s32 %s43, 1
    %p47 = scmp.eq.s32.totalorder %s9, 1
    %p48 = scmp.ne.s32.totalorder %s43, %s45
    %p49 = scmp.eq.s32.totalorder %s9, 0
    %p50 = por %p48, %p49
    %p51 = scmp.ne.s32.totalorder %s43, %s45
    %p52 = scmp.eq.s32.totalorder %s14, 1
    %p53 = por %p51, %p52
    %p54 = scmp.ne.s32.totalorder %s45, %s46
    %p55 = scmp.eq.s32.totalorder %s14, 0
    %p56 = por %p54, %p55
    %p57 = scmp.ne.s32.totalorder %s45, %s46
    %p58 = scmp.eq.s32.totalorder %s15, 1
    %p59 = por %p57, %p58
    %p61 = scmp.ne.s32.totalorder %s46, %s60
    %p62 = scmp.eq.s32.totalorder %s15, 0
    %p63 = por %p61, %p62
    %s65 = sadd.s32 %s64, 1
    %p68 = scmp.eq.s32.totalorder %s9, 1
    %p69 = scmp.ne.s32.totalorder %s64, %s66
    %p70 = scmp.eq.s32.totalorder %s9, 0
    %p71 = por %p69, %p70
    %p72 = scmp.ne.s32.totalorder %s64, %s66
    %p73 = scmp.eq.s32.totalorder %s14, 1
    %p74 = por %p72, %p73
    %p75 = scmp.ne.s32.totalorder %s66, %s67
    %p76 = scmp.eq.s32.totalorder %s14, 0
    %p77 = por %p75, %p76
    %p78 = scmp.ne.s32.totalorder %s66, %s67
    %p79 = scmp.eq.s32.totalorder %s15, 1
    %p80 = por %p78, %p79
    %p82 = scmp.ne.s32.totalorder %s67, %s81
    %p83 = scmp.eq.s32.totalorder %s15, 0
    %p84 = por %p82, %p83
    %s85 = ssub.s32 %s9, %s16
    %p86 = scmp.eq.s32.totalorder %s85, 0
    %s88 = sadd.s32 %s87, 1
    %s89 = scalar_select %p86, %s87, %s88
    %p92 = pneg %p86
    %p93 = scmp.eq.s32.totalorder %s9, 1
    %p94 = por %p92, %p93
    %p95 = scmp.ne.s32.totalorder %s87, %s90
    %p96 = scmp.eq.s32.totalorder %s9, 0
    %p97 = por %p95, %p96
    %p98 = scmp.ne.s32.totalorder %s87, %s90
    %p99 = scmp.eq.s32.totalorder %s14, 1
    %p100 = por %p98, %p99
    %p101 = scmp.ne.s32.totalorder %s90, %s91
    %p102 = scmp.eq.s32.totalorder %s14, 0
    %p103 = por %p101, %p102
    %p104 = scmp.ne.s32.totalorder %s90, %s91
    %p105 = scmp.eq.s32.totalorder %s15, 1
    %p106 = por %p104, %p105
    %p108 = scmp.ne.s32.totalorder %s91, %s107
    %p109 = scmp.eq.s32.totalorder %s15, 0
    %p110 = por %p108, %p109
    %p111 = scmp.le.s32.totalorder 1, %s9
    %p112 = scmp.lt.s32.totalorder %s9, 3
    %p113 = pnand %p111, %p112
    %p114 = pneg %p113
    // Predicated region
    $region9: #{tpu_custom_call.1} parent=5 // pred_check
      _
    $region10: #{tpu_custom_call.1} parent=5 // pred_check_branch
      %116 = sbr.rel (%p113) target = $region12
    $region11: #{tpu_custom_call.1} parent=5 // pred_region
      %s117 = ssub.s32 %s9, 1
      // Predicated region
      $region13: #{tpu_custom_call.1} parent=11 // pred_check
        %p118 = pneg %p56
      $region14: #{tpu_custom_call.1} parent=11 // pred_check_branch
        %120 = sbr.rel (%p118) target = $region16
      $region15: #{tpu_custom_call.1} parent=11 // pred_region
        _
      $region16: #{tpu_custom_call.1} parent=11 // pred_fallthru
        _
      // Predicated region
      $region17: #{tpu_custom_call.1} parent=11 // pred_check
        %p121 = pneg %p77
      $region18: #{tpu_custom_call.1} parent=11 // pred_check_branch
        %123 = sbr.rel (%p121) target = $region20
      $region19: #{tpu_custom_call.1} parent=11 // pred_region
        _
      $region20: #{tpu_custom_call.1} parent=11 // pred_fallthru
        _
    $region12: #{tpu_custom_call.1} parent=5 // pred_fallthru
      _
    %p124 = scmp.lt.s32.totalorder %s9, 2
    // Predicated region
    $region21: #{tpu_custom_call.1} parent=5 // pred_check
      %p125 = pneg %p124
    $region22: #{tpu_custom_call.1} parent=5 // pred_check_branch
      %127 = sbr.rel (%p125) target = $region24
    $region23: #{tpu_custom_call.1} parent=5 // pred_region
      // Predicated region
      $region25: #{tpu_custom_call.1} parent=23 // pred_check
        %p128 = pneg %p29
      $region26: #{tpu_custom_call.1} parent=23 // pred_check_branch
        %130 = sbr.rel (%p128) target = $region28
      $region27: #{tpu_custom_call.1} parent=23 // pred_region
        %s131 = smul.u32 32, %s9
        %p132 = scmp.lt.s32.totalorder %s131, 63
        %s133 = scalar_select %p132, %s131, 63
        %s134 = smul.addr %s133, 8
        %s135 = scalar_lea.vmem %s0, %s134
        %s136 = smul.u32 32, %s9
      $region28: #{tpu_custom_call.1} parent=23 // pred_fallthru
        _
    $region24: #{tpu_custom_call.1} parent=5 // pred_fallthru
      _
    %p137 = scmp.le.s32.totalorder 1, %s9
    %p138 = scmp.lt.s32.totalorder %s9, 3
    %p139 = pnand %p137, %p138
    %p140 = pneg %p139
    // Predicated region
    $region29: #{tpu_custom_call.1} parent=5 // pred_check
      _
    $region30: #{tpu_custom_call.1} parent=5 // pred_check_branch
      %142 = sbr.rel (%p139) target = $region32
    $region31: #{tpu_custom_call.1} parent=5 // pred_region
      %s143 = ssub.s32 %s9, 1
      %s144 = smul.u32 32, %s14
      %p145 = scmp.lt.s32.totalorder %s144, 63
      %s146 = scalar_select %p145, %s144, 63
      %s147 = smul.addr %s146, 8
      %s148 = scalar_lea.vmem %s0, %s147
      %p149 = pneg %p35
      %p150 = pneg %p32
      %p151 = pneg %p56
      %p152 = pneg %p53
      %p153 = pneg %p77
      %p154 = pneg %p74
      %p155 = pneg %p103
      %p156 = pneg %p100
      %s157 = smul.u32 32, %s14
      %p158 = scmp.lt.s32.totalorder %s157, 63
      %s159 = scalar_select %p158, %s157, 63
      %s160 = smul.addr %s159, 8
      %s161 = scalar_lea.vmem %s3, %s160
      %s162 = smul.u32 32, %s14
      %p163 = scmp.lt.s32.totalorder %s162, 63
      %s164 = scalar_select %p163, %s162, 63
      %s165 = smul.addr %s164, 8
      %s166 = scalar_lea.vmem %s0, %s165
      %s167 = smul.u32 32, %s14
      %s168 = smul.u32 32, %s14
      %p169 = scmp.lt.s32.totalorder %s168, 63
      %s170 = scalar_select %p169, %s168, 63
      %s171 = smul.addr %s170, 8
      %s172 = scalar_lea.vmem %s3, %s171
      %s173 = smul.u32 32, %s14
      %v174 = vld [vmem:[%s166] sm:$0xff]
      %v175 = vld [vmem:[%s166 + $0x8] sm:$0xff]
      %v176 = vld [vmem:[%s166 + $0x10] sm:$0xff]
      %v177 = vld [vmem:[%s166 + $0x18] sm:$0xff]
      %v178 = vld [vmem:[%s166 + $0x20] sm:$0xff]
      %v179 = vld [vmem:[%s166 + $0x28] sm:$0xff]
      %v180 = vld [vmem:[%s166 + $0x30] sm:$0xff]
      %v181 = vld [vmem:[%s166 + $0x38] sm:$0xff]
      %v182 = vld [vmem:[%s166 + $0x40] sm:$0xff]
      %v183 = vld [vmem:[%s166 + $0x48] sm:$0xff]
      %v184 = vld [vmem:[%s166 + $0x50] sm:$0xff]
      %v185 = vld [vmem:[%s166 + $0x58] sm:$0xff]
      %v186 = vld [vmem:[%s166 + $0x60] sm:$0xff]
      %v187 = vld [vmem:[%s166 + $0x68] sm:$0xff]
      %v188 = vld [vmem:[%s166 + $0x70] sm:$0xff]
      %v189 = vld [vmem:[%s166 + $0x78] sm:$0xff]
      %v190 = vld [vmem:[%s166 + $0x80] sm:$0xff]
      %v191 = vld [vmem:[%s166 + $0x88] sm:$0xff]
      %v192 = vld [vmem:[%s166 + $0x90] sm:$0xff]
      %v193 = vld [vmem:[%s166 + $0x98] sm:$0xff]
      %v194 = vld [vmem:[%s166 + $0xa0] sm:$0xff]
      %v195 = vld [vmem:[%s166 + $0xa8] sm:$0xff]
      %v196 = vld [vmem:[%s166 + $0xb0] sm:$0xff]
      %v197 = vld [vmem:[%s166 + $0xb8] sm:$0xff]
      %v198 = vld [vmem:[%s166 + $0xc0] sm:$0xff]
      %v199 = vld [vmem:[%s166 + $0xc8] sm:$0xff]
      %v200 = vld [vmem:[%s166 + $0xd0] sm:$0xff]
      %v201 = vld [vmem:[%s166 + $0xd8] sm:$0xff]
      %v202 = vld [vmem:[%s166 + $0xe0] sm:$0xff]
      %v203 = vld [vmem:[%s166 + $0xe8] sm:$0xff]
      %v204 = vld [vmem:[%s166 + $0xf0] sm:$0xff]
      %v205 = vld [vmem:[%s166 + $0xf8] sm:$0xff]
      %v206 = vld [vmem:[%s1] sm:$0xff]
      %v207 = vld [vmem:[%s1 + $0x8] sm:$0xff]
      %v208 = vld [vmem:[%s1 + $0x10] sm:$0xff]
      %v209 = vld [vmem:[%s1 + $0x18] sm:$0xff]
      %v210 = vld [vmem:[%s1 + $0x20] sm:$0xf]
      %v211 = vld [vmem:[%s2] sm:$0xff]
      %v212 = vld [vmem:[%s2 + $0x8] sm:$0xff]
      %v213 = vld [vmem:[%s2 + $0x10] sm:$0xff]
      %v214 = vld [vmem:[%s2 + $0x18] sm:$0xff]
      %v215 = vld [vmem:[%s2 + $0x20] sm:$0xff]
      %v216 = vld [vmem:[%s2 + $0x28] sm:$0xff]
      %v217 = vld [vmem:[%s2 + $0x30] sm:$0xff]
      %v218 = vld [vmem:[%s2 + $0x38] sm:$0xff]
      %v219 = vld [vmem:[%s2 + $0x40] sm:$0xff]
      %v220 = vld [vmem:[%s2 + $0x48] sm:$0xff]
      %v221 = vld [vmem:[%s2 + $0x50] sm:$0xff]
      %v222 = vld [vmem:[%s2 + $0x58] sm:$0xff]
      %v223 = vld [vmem:[%s2 + $0x60] sm:$0xff]
      %v224 = vld [vmem:[%s2 + $0x68] sm:$0xff]
      %v225 = vld [vmem:[%s2 + $0x70] sm:$0xff]
      %v226 = vld [vmem:[%s2 + $0x78] sm:$0xff]
      %v227 = vld [vmem:[%s2 + $0x80] sm:$0xff]
      %v228 = vld [vmem:[%s2 + $0x88] sm:$0xff]
      %v229 = vld [vmem:[%s2 + $0x90] sm:$0xff]
      %v230 = vld [vmem:[%s2 + $0x98] sm:$0xff]
      %v231 = vld [vmem:[%s2 + $0xa0] sm:$0xff]
      %v232 = vld [vmem:[%s2 + $0xa8] sm:$0xff]
      %v233 = vld [vmem:[%s2 + $0xb0] sm:$0xff]
      %v234 = vld [vmem:[%s2 + $0xb8] sm:$0xff]
      %v235 = vld [vmem:[%s2 + $0xc0] sm:$0xff]
      %v236 = vld [vmem:[%s2 + $0xc8] sm:$0xff]
      %v237 = vld [vmem:[%s2 + $0xd0] sm:$0xff]
      %v238 = vld [vmem:[%s2 + $0xd8] sm:$0xff]
      %v239 = vld [vmem:[%s2 + $0xe0] sm:$0xff]
      %v240 = vld [vmem:[%s2 + $0xe8] sm:$0xff]
      %v241 = vld [vmem:[%s2 + $0xf0] sm:$0xff]
      %v242 = vld [vmem:[%s2 + $0xf8] sm:$0xff]
      %vm243 = vcmask 293888
      %v245 = vsel %vm243, %v174, 0
      %v248 = vsel %vm243, %v175, 0
      %v251 = vsel %vm243, %v176, 0
      %v254 = vsel %vm243, %v177, 0
      %v257 = vsel %vm243, %v178, 0
      %v260 = vsel %vm243, %v179, 0
      %v263 = vsel %vm243, %v180, 0
      %v266 = vsel %vm243, %v181, 0
      %v269 = vsel %vm243, %v182, 0
      %v272 = vsel %vm243, %v183, 0
      %v275 = vsel %vm243, %v184, 0
      %v278 = vsel %vm243, %v185, 0
      %v281 = vsel %vm243, %v186, 0
      %v284 = vsel %vm243, %v187, 0
      %v287 = vsel %vm243, %v188, 0
      %v290 = vsel %vm243, %v189, 0
      %v293 = vsel %vm243, %v190, 0
      %v296 = vsel %vm243, %v191, 0
      %v299 = vsel %vm243, %v192, 0
      %v302 = vsel %vm243, %v193, 0
      %v305 = vsel %vm243, %v194, 0
      %v308 = vsel %vm243, %v195, 0
      %v311 = vsel %vm243, %v196, 0
      %v314 = vsel %vm243, %v197, 0
      %v317 = vsel %vm243, %v198, 0
      %v320 = vsel %vm243, %v199, 0
      %v323 = vsel %vm243, %v200, 0
      %v326 = vsel %vm243, %v201, 0
      %v329 = vsel %vm243, %v202, 0
      %v332 = vsel %vm243, %v203, 0
      %v335 = vsel %vm243, %v204, 0
      %v338 = vsel %vm243, %v205, 0
      %vm340 = vcmask 1043456
      %v342 = vsel %vm340, %v210, 0
      %344 = vmatprep.subr.mxu0 0.0
      %345 = vmatpush1.msra.mxu0 %v206
      %346 = vmatprep.subr.mxu0 0.0
      %347 = vmatpush1.msra.mxu0 %v207
      %348 = vmatprep.subr.mxu0 0.0
      %349 = vmatpush1.msra.mxu0 %v208
      %350 = vmatprep.subr.mxu0 0.0
      %351 = vmatpush1.msra.mxu0 %v209
      %352 = vmatprep.subr.mxu0 0.0
      %353 = vmatpush1.msra.mxu0 %v342
      %354 = vmatprep.subr.mxu0 0.0
      %355 = vmatpush1.msra.mxu0 0.0
      %356 = vmatprep.subr.mxu0 0.0
      %357 = vmatpush1.msra.mxu0 0.0
      %358 = vmatprep.subr.mxu0 0.0
      %359 = vmatpush1.msra.mxu0 0.0
      %360 = vmatprep.subr.mxu0 0.0
      %361 = vmatpush1.msra.mxu0 0.0
      %362 = vmatprep.subr.mxu0 0.0
      %363 = vmatpush1.msra.mxu0 0.0
      %364 = vmatprep.subr.mxu0 0.0
      %365 = vmatpush1.msra.mxu0 0.0
      %366 = vmatprep.subr.mxu0 0.0
      %367 = vmatpush1.msra.mxu0 0.0
      %368 = vmatprep.subr.mxu0 0.0
      %369 = vmatpush1.msra.mxu0 0.0
      %370 = vmatprep.subr.mxu0 0.0
      %371 = vmatpush1.msra.mxu0 0.0
      %372 = vmatprep.subr.mxu0 0.0
      %373 = vmatpush1.msra.mxu0 0.0
      %374 = vmatprep.subr.mxu0 0.0
      %375 = vmatpush1.msra.mxu0 0.0
      %376 = vmatprep.subr.mxu0 0.0
      %377 = vmatpush1.msra.mxu0 0.0
      %378 = vmatprep.subr.mxu0 0.0
      %379 = vmatpush1.msra.mxu0 0.0
      %380 = vmatprep.subr.mxu0 0.0
      %381 = vmatpush1.msra.mxu0 0.0
      %382 = vmatprep.subr.mxu0 0.0
      %383 = vmatpush1.msra.mxu0 0.0
      %384 = vmatprep.subr.mxu0 0.0
      %385 = vmatpush1.msra.mxu0 0.0
      %386 = vmatprep.subr.mxu0 0.0
      %387 = vmatpush1.msra.mxu0 0.0
      %388 = vmatprep.subr.mxu0 0.0
      %389 = vmatpush1.msra.mxu0 0.0
      %390 = vmatprep.subr.mxu0 0.0
      %391 = vmatpush1.msra.mxu0 0.0
      %392 = vmatprep.subr.mxu0 0.0
      %393 = vmatpush1.msra.mxu0 0.0
      %394 = vmatprep.subr.mxu0 0.0
      %395 = vmatpush1.msra.mxu0 0.0
      %396 = vmatprep.subr.mxu0 0.0
      %397 = vmatpush1.msra.mxu0 0.0
      %398 = vmatprep.subr.mxu0 0.0
      %399 = vmatpush1.msra.mxu0 0.0
      %400 = vmatprep.subr.mxu0 0.0
      %401 = vmatpush1.msra.mxu0 0.0
      %402 = vmatprep.subr.mxu0 0.0
      %403 = vmatpush1.msra.mxu0 0.0
      %404 = vmatprep.subr.mxu0 0.0
      %405 = vmatpush1.msra.mxu0 0.0
      %406 = vmatprep.subr.mxu0 0.0
      %407 = vmatpush1.msra.mxu0 0.0
      %408 = vmatprep.mubr.f32.mxu0 0.0
      %409 = vmatmul.mubr.f32.gmra.mrb[0].mxu0 %v245
      %v410 = vpop.f32.mrb[0].mxu0
      %v411 = vadd.f32 %v211, %v410
      %v412 = vpop.f32.mrb[0].mxu0
      %413 = vmatprep.mubr.f32.mxu0 0.0
      %414 = vmatmul.mubr.f32.gmra.mrb[0].mxu0 %v248
      %v415 = vpop.f32.mrb[0].mxu0
      %v416 = vadd.f32 %v212, %v415
      %v417 = vpop.f32.mrb[0].mxu0
      %418 = vmatprep.mubr.f32.mxu0 0.0
      %419 = vmatmul.mubr.f32.gmra.mrb[0].mxu0 %v251
      %v420 = vpop.f32.mrb[0].mxu0
      %v421 = vadd.f32 %v213, %v420
      %v422 = vpop.f32.mrb[0].mxu0
      %423 = vmatprep.mubr.f32.mxu0 0.0
      %424 = vmatmul.mubr.f32.gmra.mrb[0].mxu0 %v254
      %v425 = vpop.f32.mrb[0].mxu0
      %v426 = vadd.f32 %v214, %v425
      %v427 = vpop.f32.mrb[0].mxu0
      %428 = vmatprep.mubr.f32.mxu0 0.0
      %429 = vmatmul.mubr.f32.gmra.mrb[0].mxu0 %v257
      %v430 = vpop.f32.mrb[0].mxu0
      %v431 = vadd.f32 %v215, %v430
      %v432 = vpop.f32.mrb[0].mxu0
      %433 = vmatprep.mubr.f32.mxu0 0.0
      %434 = vmatmul.mubr.f32.gmra.mrb[0].mxu0 %v260
      %v435 = vpop.f32.mrb[0].mxu0
      %v436 = vadd.f32 %v216, %v435
      %v437 = vpop.f32.mrb[0].mxu0
      %438 = vmatprep.mubr.f32.mxu0 0.0
      %439 = vmatmul.mubr.f32.gmra.mrb[0].mxu0 %v263
      %v440 = vpop.f32.mrb[0].mxu0
      %v441 = vadd.f32 %v217, %v440
      %v442 = vpop.f32.mrb[0].mxu0
      %443 = vmatprep.mubr.f32.mxu0 0.0
      %444 = vmatmul.mubr.f32.gmra.mrb[0].mxu0 %v266
      %v445 = vpop.f32.mrb[0].mxu0
      %v446 = vadd.f32 %v218, %v445
      %v447 = vpop.f32.mrb[0].mxu0
      %448 = vmatprep.mubr.f32.mxu0 0.0
      %449 = vmatmul.mubr.f32.gmra.mrb[0].mxu0 %v269
      %v450 = vpop.f32.mrb[0].mxu0
      %v451 = vadd.f32 %v219, %v450
      %v452 = vpop.f32.mrb[0].mxu0
      %453 = vmatprep.mubr.f32.mxu0 0.0
      %454 = vmatmul.mubr.f32.gmra.mrb[0].mxu0 %v272
      %v455 = vpop.f32.mrb[0].mxu0
      %v456 = vadd.f32 %v220, %v455
      %v457 = vpop.f32.mrb[0].mxu0
      %458 = vmatprep.mubr.f32.mxu0 0.0
      %459 = vmatmul.mubr.f32.gmra.mrb[0].mxu0 %v275
      %v460 = vpop.f32.mrb[0].mxu0
      %v461 = vadd.f32 %v221, %v460
      %v462 = vpop.f32.mrb[0].mxu0
      %463 = vmatprep.mubr.f32.mxu0 0.0
      %464 = vmatmul.mubr.f32.gmra.mrb[0].mxu0 %v278
      %v465 = vpop.f32.mrb[0].mxu0
      %v466 = vadd.f32 %v222, %v465
      %v467 = vpop.f32.mrb[0].mxu0
      %468 = vmatprep.mubr.f32.mxu0 0.0
      %469 = vmatmul.mubr.f32.gmra.mrb[0].mxu0 %v281
      %v470 = vpop.f32.mrb[0].mxu0
      %v471 = vadd.f32 %v223, %v470
      %v472 = vpop.f32.mrb[0].mxu0
      %473 = vmatprep.mubr.f32.mxu0 0.0
      %474 = vmatmul.mubr.f32.gmra.mrb[0].mxu0 %v284
      %v475 = vpop.f32.mrb[0].mxu0
      %v476 = vadd.f32 %v224, %v475
      %v477 = vpop.f32.mrb[0].mxu0
      %478 = vmatprep.mubr.f32.mxu0 0.0
      %479 = vmatmul.mubr.f32.gmra.mrb[0].mxu0 %v287
      %v480 = vpop.f32.mrb[0].mxu0
      %v481 = vadd.f32 %v225, %v480
      %v482 = vpop.f32.mrb[0].mxu0
      %483 = vmatprep.mubr.f32.mxu0 0.0
      %484 = vmatmul.mubr.f32.gmra.mrb[0].mxu0 %v290
      %v485 = vpop.f32.mrb[0].mxu0
      %v486 = vadd.f32 %v226, %v485
      %v487 = vpop.f32.mrb[0].mxu0
      %488 = vmatprep.mubr.f32.mxu0 0.0
      %489 = vmatmul.mubr.f32.gmra.mrb[0].mxu0 %v293
      %v490 = vpop.f32.mrb[0].mxu0
      %v491 = vadd.f32 %v227, %v490
      %v492 = vpop.f32.mrb[0].mxu0
      %493 = vmatprep.mubr.f32.mxu0 0.0
      %494 = vmatmul.mubr.f32.gmra.mrb[0].mxu0 %v296
      %v495 = vpop.f32.mrb[0].mxu0
      %v496 = vadd.f32 %v228, %v495
      %v497 = vpop.f32.mrb[0].mxu0
      %498 = vmatprep.mubr.f32.mxu0 0.0
      %499 = vmatmul.mubr.f32.gmra.mrb[0].mxu0 %v299
      %v500 = vpop.f32.mrb[0].mxu0
      %v501 = vadd.f32 %v229, %v500
      %v502 = vpop.f32.mrb[0].mxu0
      %503 = vmatprep.mubr.f32.mxu0 0.0
      %504 = vmatmul.mubr.f32.gmra.mrb[0].mxu0 %v302
      %v505 = vpop.f32.mrb[0].mxu0
      %v506 = vadd.f32 %v230, %v505
      %v507 = vpop.f32.mrb[0].mxu0
      %508 = vmatprep.mubr.f32.mxu0 0.0
      %509 = vmatmul.mubr.f32.gmra.mrb[0].mxu0 %v305
      %v510 = vpop.f32.mrb[0].mxu0
      %v511 = vadd.f32 %v231, %v510
      %v512 = vpop.f32.mrb[0].mxu0
      %513 = vmatprep.mubr.f32.mxu0 0.0
      %514 = vmatmul.mubr.f32.gmra.mrb[0].mxu0 %v308
      %v515 = vpop.f32.mrb[0].mxu0
      %v516 = vadd.f32 %v232, %v515
      %v517 = vpop.f32.mrb[0].mxu0
      %518 = vmatprep.mubr.f32.mxu0 0.0
      %519 = vmatmul.mubr.f32.gmra.mrb[0].mxu0 %v311
      %v520 = vpop.f32.mrb[0].mxu0
      %v521 = vadd.f32 %v233, %v520
      %v522 = vpop.f32.mrb[0].mxu0
      %523 = vmatprep.mubr.f32.mxu0 0.0
      %524 = vmatmul.mubr.f32.gmra.mrb[0].mxu0 %v314
      %v525 = vpop.f32.mrb[0].mxu0
      %v526 = vadd.f32 %v234, %v525
      %v527 = vpop.f32.mrb[0].mxu0
      %528 = vmatprep.mubr.f32.mxu0 0.0
      %529 = vmatmul.mubr.f32.gmra.mrb[0].mxu0 %v317
      %v530 = vpop.f32.mrb[0].mxu0
      %v531 = vadd.f32 %v235, %v530
      %v532 = vpop.f32.mrb[0].mxu0
      %533 = vmatprep.mubr.f32.mxu0 0.0
      %534 = vmatmul.mubr.f32.gmra.mrb[0].mxu0 %v320
      %v535 = vpop.f32.mrb[0].mxu0
      %v536 = vadd.f32 %v236, %v535
      %v537 = vpop.f32.mrb[0].mxu0
      %538 = vmatprep.mubr.f32.mxu0 0.0
      %539 = vmatmul.mubr.f32.gmra.mrb[0].mxu0 %v323
      %v540 = vpop.f32.mrb[0].mxu0
      %v541 = vadd.f32 %v237, %v540
      %v542 = vpop.f32.mrb[0].mxu0
      %543 = vmatprep.mubr.f32.mxu0 0.0
      %544 = vmatmul.mubr.f32.gmra.mrb[0].mxu0 %v326
      %v545 = vpop.f32.mrb[0].mxu0
      %v546 = vadd.f32 %v238, %v545
      %v547 = vpop.f32.mrb[0].mxu0
      %548 = vmatprep.mubr.f32.mxu0 0.0
      %549 = vmatmul.mubr.f32.gmra.mrb[0].mxu0 %v329
      %v550 = vpop.f32.mrb[0].mxu0
      %v551 = vadd.f32 %v239, %v550
      %v552 = vpop.f32.mrb[0].mxu0
      %553 = vmatprep.mubr.f32.mxu0 0.0
      %554 = vmatmul.mubr.f32.gmra.mrb[0].mxu0 %v332
      %v555 = vpop.f32.mrb[0].mxu0
      %v556 = vadd.f32 %v240, %v555
      %v557 = vpop.f32.mrb[0].mxu0
      %558 = vmatprep.mubr.f32.mxu0 0.0
      %559 = vmatmul.mubr.f32.gmra.mrb[0].mxu0 %v335
      %v560 = vpop.f32.mrb[0].mxu0
      %v561 = vadd.f32 %v241, %v560
      %v562 = vpop.f32.mrb[0].mxu0
      %563 = vmatprep.mubr.f32.mxu0 0.0
      %564 = vmatmul.mubr.f32.gmra.mrb[0].mxu0 %v338
      %v565 = vpop.f32.mrb[0].mxu0
      %v566 = vadd.f32 %v242, %v565
      %v567 = vpop.f32.mrb[0].mxu0
      %568 = vdwg.mxu0
      %v569 = vmax.f32 %v411, 0.0
      %v570 = vmax.f32 %v416, 0.0
      %v571 = vmax.f32 %v421, 0.0
      %v572 = vmax.f32 %v426, 0.0
      %v573 = vmax.f32 %v431, 0.0
      %v574 = vmax.f32 %v436, 0.0
      %v575 = vmax.f32 %v441, 0.0
      %v576 = vmax.f32 %v446, 0.0
      %v577 = vmax.f32 %v451, 0.0
      %v578 = vmax.f32 %v456, 0.0
      %v579 = vmax.f32 %v461, 0.0
      %v580 = vmax.f32 %v466, 0.0
      %v581 = vmax.f32 %v471, 0.0
      %v582 = vmax.f32 %v476, 0.0
      %v583 = vmax.f32 %v481, 0.0
      %v584 = vmax.f32 %v486, 0.0
      %v585 = vmax.f32 %v491, 0.0
      %v586 = vmax.f32 %v496, 0.0
      %v587 = vmax.f32 %v501, 0.0
      %v588 = vmax.f32 %v506, 0.0
      %v589 = vmax.f32 %v511, 0.0
      %v590 = vmax.f32 %v516, 0.0
      %v591 = vmax.f32 %v521, 0.0
      %v592 = vmax.f32 %v526, 0.0
      %v593 = vmax.f32 %v531, 0.0
      %v594 = vmax.f32 %v536, 0.0
      %v595 = vmax.f32 %v541, 0.0
      %v596 = vmax.f32 %v546, 0.0
      %v597 = vmax.f32 %v551, 0.0
      %v598 = vmax.f32 %v556, 0.0
      %v599 = vmax.f32 %v561, 0.0
      %v600 = vmax.f32 %v566, 0.0
      %vm601 = vcmask 523264
      %602 = vst.msk [vmem:[%s172] sm:$0xff] %vm601, %v569
      %603 = vst.msk [vmem:[%s172 + $0x8] sm:$0xff] %vm601, %v570
      %604 = vst.msk [vmem:[%s172 + $0x10] sm:$0xff] %vm601, %v571
      %605 = vst.msk [vmem:[%s172 + $0x18] sm:$0xff] %vm601, %v572
      %606 = vst.msk [vmem:[%s172 + $0x20] sm:$0xff] %vm601, %v573
      %607 = vst.msk [vmem:[%s172 + $0x28] sm:$0xff] %vm601, %v574
      %608 = vst.msk [vmem:[%s172 + $0x30] sm:$0xff] %vm601, %v575
      %609 = vst.msk [vmem:[%s172 + $0x38] sm:$0xff] %vm601, %v576
      %610 = vst.msk [vmem:[%s172 + $0x40] sm:$0xff] %vm601, %v577
      %611 = vst.msk [vmem:[%s172 + $0x48] sm:$0xff] %vm601, %v578
      %612 = vst.msk [vmem:[%s172 + $0x50] sm:$0xff] %vm601, %v579
      %613 = vst.msk [vmem:[%s172 + $0x58] sm:$0xff] %vm601, %v580
      %614 = vst.msk [vmem:[%s172 + $0x60] sm:$0xff] %vm601, %v581
      %615 = vst.msk [vmem:[%s172 + $0x68] sm:$0xff] %vm601, %v582
      %616 = vst.msk [vmem:[%s172 + $0x70] sm:$0xff] %vm601, %v583
      %617 = vst.msk [vmem:[%s172 + $0x78] sm:$0xff] %vm601, %v584
      %618 = vst.msk [vmem:[%s172 + $0x80] sm:$0xff] %vm601, %v585
      %619 = vst.msk [vmem:[%s172 + $0x88] sm:$0xff] %vm601, %v586
      %620 = vst.msk [vmem:[%s172 + $0x90] sm:$0xff] %vm601, %v587
      %621 = vst.msk [vmem:[%s172 + $0x98] sm:$0xff] %vm601, %v588
      %622 = vst.msk [vmem:[%s172 + $0xa0] sm:$0xff] %vm601, %v589
      %623 = vst.msk [vmem:[%s172 + $0xa8] sm:$0xff] %vm601, %v590
      %624 = vst.msk [vmem:[%s172 + $0xb0] sm:$0xff] %vm601, %v591
      %625 = vst.msk [vmem:[%s172 + $0xb8] sm:$0xff] %vm601, %v592
      %626 = vst.msk [vmem:[%s172 + $0xc0] sm:$0xff] %vm601, %v593
      %627 = vst.msk [vmem:[%s172 + $0xc8] sm:$0xff] %vm601, %v594
      %628 = vst.msk [vmem:[%s172 + $0xd0] sm:$0xff] %vm601, %v595
      %629 = vst.msk [vmem:[%s172 + $0xd8] sm:$0xff] %vm601, %v596
      %630 = vst.msk [vmem:[%s172 + $0xe0] sm:$0xff] %vm601, %v597
      %631 = vst.msk [vmem:[%s172 + $0xe8] sm:$0xff] %vm601, %v598
      %632 = vst.msk [vmem:[%s172 + $0xf0] sm:$0xff] %vm601, %v599
      %633 = vst.msk [vmem:[%s172 + $0xf8] sm:$0xff] %vm601, %v600
      %s634 = smul.u32 32, %s14
      %p635 = scmp.lt.s32.totalorder %s634, 63
      %s636 = scalar_select %p635, %s634, 63
      %s637 = smul.addr %s636, 8
      %s638 = scalar_lea.vmem %s3, %s637
      // Predicated region
      $region33: #{tpu_custom_call.1} parent=31 // pred_check
        %p639 = pneg %p100
      $region34: #{tpu_custom_call.1} parent=31 // pred_check_branch
        %641 = sbr.rel (%p639) target = $region36
      $region35: #{tpu_custom_call.1} parent=31 // pred_region
        %s642 = smul.u32 32, %s14
      $region36: #{tpu_custom_call.1} parent=31 // pred_fallthru
        _
    $region32: #{tpu_custom_call.1} parent=5 // pred_fallthru
      _
    %p643 = scmp.le.s32.totalorder 2, %s9
    // Predicated region
    $region37: #{tpu_custom_call.1} parent=5 // pred_check
      %p644 = pneg %p643
    $region38: #{tpu_custom_call.1} parent=5 // pred_check_branch
      %646 = sbr.rel (%p644) target = $region40
    $region39: #{tpu_custom_call.1} parent=5 // pred_region
      %s647 = ssub.s32 %s9, 2
      // Predicated region
      $region41: #{tpu_custom_call.1} parent=39 // pred_check
        %p648 = pneg %p106
      $region42: #{tpu_custom_call.1} parent=39 // pred_check_branch
        %650 = sbr.rel (%p648) target = $region44
      $region43: #{tpu_custom_call.1} parent=39 // pred_region
        %s651 = smul.u32 32, %s15
        %p652 = scmp.lt.s32.totalorder %s651, 63
        %s653 = scalar_select %p652, %s651, 63
        %s654 = smul.addr %s653, 8
        %s655 = scalar_lea.vmem %s3, %s654
      $region44: #{tpu_custom_call.1} parent=39 // pred_fallthru
        _
    $region40: #{tpu_custom_call.1} parent=5 // pred_fallthru
      _
  $region6: #{tpu_custom_call.1} parent=0 // loop_footer
    %s13 = sadd.s32 1, %s9
  $region7: #{tpu_custom_call.1} parent=0 // loop_footer_branch
    %8 = sbr.rel target = $region3
  $region8: #{tpu_custom_call.1} parent=0 // loop_exit
    _

</llo_original>
